<compile_context>
chip_gen: v6e
topology: v6e:2x2x1
jax: 0.10.0
libtpu: 0.0.40
codegen_flags: <defaults>
</compile_context>

<pallas_src>
import jax
import jax.numpy as jnp
from jax.experimental import pallas as pl
from jax.experimental.pallas import tpu as pltpu

C_OUT = 16           # conv1 out_channels
L = 16               # sequence length after view(-1, 1, 16)
L_POOL = 8           # length after MaxPool1d(2, 2)
F = C_OUT * L_POOL   # 128 flattened features
H1 = 64              # fc1 out features
H2 = 2               # fc2 out features


def simple_cnn_kernel(x_ref, wconv_ref, cbias_ref, w1t_ref, b1_ref, w2_ref, b2_ref, out_ref):
    x = x_ref[...]                                                     # (TB, 16) bf16
    # Conv1d(padding=1) for all 16 channels at all 16 positions as one MXU matmul
    # (bf16 operands, f32 accumulation).
    y = jnp.dot(x, wconv_ref[...], preferred_element_type=jnp.float32)  # (TB, 256) f32
    # MaxPool1d(2,2): max(even, odd) -- lane-128 split is a vreg-aligned (free) slice.
    # Bias is identical in both halves, so add it after the max; then ReLU (ReLU is
    # monotone, so max-then-relu == relu-then-max).  Result is the lane-dense (TB,128)
    # flattened feature block in PyTorch flatten order (feature index = c*8 + j).
    pooled = jnp.maximum(jnp.maximum(y[:, :F], y[:, F:]) + cbias_ref[...], 0.0)  # (TB,128) f32
    # fc1 + ReLU: single K=128 bf16 matmul, f32 accumulation; bias/relu in f32.
    h = jnp.maximum(
        jnp.dot(pooled.astype(jnp.bfloat16), w1t_ref[...],
                preferred_element_type=jnp.float32) + b1_ref[...],
        0.0)                                                           # (TB, 64) f32
    # fc2 (N=2) on the VPU/XLU instead of the MXU: broadcast-multiply against the two
    # lane-dense weight rows and lane-reduce.  Keeps the MXU free of a 2/256-utilized tile.
    w2 = w2_ref[...]                                                   # (2, 64) f32
    out0 = jnp.sum(h * w2[0:1, :], axis=-1, keepdims=True)             # (TB, 1)
    out1 = jnp.sum(h * w2[1:2, :], axis=-1, keepdims=True)             # (TB, 1)
    out = jnp.concatenate([out0, out1], axis=-1) + b2_ref[...]         # (TB, 2)
    out_ref[...] = out.astype(out_ref.dtype)


def _build_conv_matrix(conv_w, conv_b):
    """Banded (16, 256) matrix + (1, 128) bias row implementing Conv1d(1,16,k=3,p=1).

    Columns [0,128): channel-c conv output at even positions l=2j (col = c*8+j).
    Columns [128,256): channel-c conv output at odd positions l=2j+1.
    The bias row covers one 128-lane half (it is identical in both halves).
    """
    w = conv_w[:, 0, :].astype(jnp.float32)            # (16, 3)
    i_idx = jnp.arange(L)[:, None]                     # (16, 1) input position
    j_idx = jnp.arange(L_POOL)[None, :]                # (1, 8)  pooled position
    # out[c, l] = sum_k w[c,k] * x[l-1+k]  (x out of range -> 0)
    band_even = jnp.stack(
        [(i_idx == 2 * j_idx - 1 + k).astype(jnp.float32) for k in range(3)], axis=0)  # (3,16,8)
    band_odd = jnp.stack(
        [(i_idx == 2 * j_idx + k).astype(jnp.float32) for k in range(3)], axis=0)      # (3,16,8)
    w_even = jnp.einsum("kij,ck->icj", band_even, w).reshape(L, F)     # (16, 128)
    w_odd = jnp.einsum("kij,ck->icj", band_odd, w).reshape(L, F)       # (16, 128)
    wconv = jnp.concatenate([w_even, w_odd], axis=1)                   # (16, 256)
    cbias = jnp.repeat(conv_b.astype(jnp.float32), L_POOL).reshape(1, F)  # (1, 128)
    return wconv, cbias


def simple_1d_cnn(x, conv_w, conv_b, fc1_w, fc1_b, fc2_w, fc2_b):
    """conv_w: (16,1,3)  conv_b: (16,)  fc1_w: (64,128)  fc1_b: (64,)  fc2_w: (2,64)  fc2_b: (2,)"""
    x2 = x.reshape(-1, L)                               # mirrors x.view(-1, 1, 16)
    B = x2.shape[0]

    # Balanced batch tiling: cap padding at 7 rows instead of up to a whole tile.
    MAX_TB = 2048
    n_tiles = pl.cdiv(B, MAX_TB)
    if B >= 1024:
        # v7x megacore: ensure an even number of grid steps so both TCs get work
        # (no measurable cost on single-TC v5e/v6e).
        n_tiles = ((n_tiles + 1) // 2) * 2
    TB = ((pl.cdiv(B, n_tiles) + 7) // 8) * 8
    B_pad = n_tiles * TB
    if B_pad != B:
        x2 = jnp.pad(x2, ((0, B_pad - B), (0, 0)))      # remainder rows handled by padding

    # bf16 operands for the two MXU matmuls (f32 accumulation inside the kernel).
    x2 = x2.astype(jnp.bfloat16)
    wconv, cbias = _build_conv_matrix(conv_w, conv_b)   # (16, 256) f32, (1, 128) f32
    wconv = wconv.astype(jnp.bfloat16)
    w1t = fc1_w.T.astype(jnp.bfloat16)                  # (128, 64) bf16
    b1 = fc1_b.reshape(1, H1).astype(jnp.float32)       # (1, 64) f32
    w2 = fc2_w.astype(jnp.float32)                      # (2, 64) f32 (lane-dense rows, VPU path)
    b2 = fc2_b.reshape(1, H2).astype(jnp.float32)       # (1, 2) f32

    out = pl.pallas_call(
        simple_cnn_kernel,
        out_shape=jax.ShapeDtypeStruct((B_pad, H2), jnp.float32),
        grid=(n_tiles,),
        in_specs=[
            pl.BlockSpec((TB, L), lambda i: (i, 0)),           # x         (varies per step)
            pl.BlockSpec((L, 2 * F), lambda i: (0, 0)),        # Wconv     (resident)
            pl.BlockSpec((1, F), lambda i: (0, 0)),            # conv bias (resident)
            pl.BlockSpec((F, H1), lambda i: (0, 0)),           # fc1 W^T   (resident)
            pl.BlockSpec((1, H1), lambda i: (0, 0)),           # fc1 b     (resident)
            pl.BlockSpec((H2, H1), lambda i: (0, 0)),          # fc2 W     (resident)
            pl.BlockSpec((1, H2), lambda i: (0, 0)),           # fc2 b     (resident)
        ],
        out_specs=pl.BlockSpec((TB, H2), lambda i: (i, 0)),
        compiler_params=pltpu.CompilerParams(
            dimension_semantics=("parallel",)),
    )(x2, wconv, cbias, w1t, b1, w2, b2)

    return out[:B]


def ref_forward(x, conv_w, conv_b, fc1_w, fc1_b, fc2_w, fc2_b):
    """Pure-JAX f32 reference matching the PyTorch forward exactly."""
    xr = x.reshape(-1, 1, L)
    xpad = jnp.pad(xr, ((0, 0), (0, 0), (1, 1)))
    cols = jnp.stack([xpad[:, 0, k:k + L] for k in range(3)], axis=-1)   # (B, 16, 3)
    y = jnp.einsum("blk,ck->bcl", cols, conv_w[:, 0, :]) + conv_b[None, :, None]
    y = jnp.maximum(y, 0.0)                                              # ReLU
    pooled = jnp.max(y.reshape(-1, C_OUT, L_POOL, 2), axis=-1)           # MaxPool1d(2,2)
    flat = pooled.reshape(-1, F)                                         # (B, 128)
    h = jnp.maximum(flat @ fc1_w.T + fc1_b, 0.0)
    return h @ fc2_w.T + fc2_b


if __name__ == "__main__":
    key = jax.random.PRNGKey(0)
    k_x, k_cw, k_cb, k_w1, k_b1, k_w2, k_b2 = jax.random.split(key, 7)

    B = 12   # deliberately not a multiple of 8 to exercise the padded-remainder path
    x = jax.random.normal(k_x, (B, L), dtype=jnp.float32)

    conv_w = 0.1 * jax.random.normal(k_cw, (C_OUT, 1, 3), dtype=jnp.float32)
    conv_b = 0.1 * jax.random.normal(k_cb, (C_OUT,), dtype=jnp.float32)
    fc1_w = 0.1 * jax.random.normal(k_w1, (H1, F), dtype=jnp.float32)
    fc1_b = 0.1 * jax.random.normal(k_b1, (H1,), dtype=jnp.float32)
    fc2_w = 0.1 * jax.random.normal(k_w2, (H2, H1), dtype=jnp.float32)
    fc2_b = 0.1 * jax.random.normal(k_b2, (H2,), dtype=jnp.float32)

    out = simple_1d_cnn(x, conv_w, conv_b, fc1_w, fc1_b, fc2_w, fc2_b)
    out = jax.block_until_ready(out)

    ref = ref_forward(x, conv_w, conv_b, fc1_w, fc1_b, fc2_w, fc2_b)
    assert out.shape == (B, H2), out.shape
    # bf16 MXU operands with f32 accumulation -> ~1e-3 relative error; use 1e-2 tolerance.
    assert jnp.allclose(out, ref, atol=1e-2, rtol=1e-2), (out, ref)

    print("KERNEL_OK")
</pallas_src>

<mosaic_0001>
module attributes {stable_mosaic.version = 11 : i64} {
  func.func @simple_cnn_kernel(%arg0: i32, %arg1: memref<16x16xbf16, #tpu.memory_space<vmem>>, %arg2: memref<16x256xbf16, #tpu.memory_space<vmem>>, %arg3: memref<1x128xf32, #tpu.memory_space<vmem>>, %arg4: memref<128x64xbf16, #tpu.memory_space<vmem>>, %arg5: memref<1x64xf32, #tpu.memory_space<vmem>>, %arg6: memref<2x64xf32, #tpu.memory_space<vmem>>, %arg7: memref<1x2xf32, #tpu.memory_space<vmem>>, %arg8: memref<16x2xf32, #tpu.memory_space<vmem>>) attributes {dimension_semantics = [#tpu.dimension_semantics<parallel>], iteration_bounds = array<i64: 1>, scalar_prefetch = 0 : i64, scratch_operands = 0 : i64, tpu.core_type = #tpu.core_type<tc>, window_params = [{transform_indices = @transform_0, window_bounds = array<i64: 16, 16>}, {pipeline_mode = #tpu.pipeline_mode<synchronous>, transform_indices = @transform_1, window_bounds = array<i64: 16, 256>}, {pipeline_mode = #tpu.pipeline_mode<synchronous>, transform_indices = @transform_2, window_bounds = array<i64: 1, 128>}, {pipeline_mode = #tpu.pipeline_mode<synchronous>, transform_indices = @transform_3, window_bounds = array<i64: 128, 64>}, {pipeline_mode = #tpu.pipeline_mode<synchronous>, transform_indices = @transform_4, window_bounds = array<i64: 1, 64>}, {pipeline_mode = #tpu.pipeline_mode<synchronous>, transform_indices = @transform_5, window_bounds = array<i64: 2, 64>}, {pipeline_mode = #tpu.pipeline_mode<synchronous>, transform_indices = @transform_6, window_bounds = array<i64: 1, 2>}, {transform_indices = @transform_7, window_bounds = array<i64: 16, 2>}]} {
    %c0 = arith.constant 0 : index
    %c0_0 = arith.constant 0 : index
    %0 = vector.load %arg1[%c0, %c0_0] : memref<16x16xbf16, #tpu.memory_space<vmem>>, vector<16x16xbf16>
    %c0_1 = arith.constant 0 : index
    %c0_2 = arith.constant 0 : index
    %1 = vector.load %arg2[%c0_1, %c0_2] : memref<16x256xbf16, #tpu.memory_space<vmem>>, vector<16x256xbf16>
    %cst = arith.constant dense<0.000000e+00> : vector<16x256xf32>
    %2 = tpu.matmul %0, %1, %cst {dimension_numbers = #tpu.dot_dimension_numbers<[1], [0], [0], [1], [0, 0, 1, 1], [], []>} : vector<16x16xbf16>, vector<16x256xbf16>, vector<16x256xf32> -> vector<16x256xf32>
    %3 = vector.extract_strided_slice %2 {offsets = [0, 0], sizes = [16, 128], strides = [1, 1]} : vector<16x256xf32> to vector<16x128xf32>
    %4 = vector.extract_strided_slice %2 {offsets = [0, 128], sizes = [16, 128], strides = [1, 1]} : vector<16x256xf32> to vector<16x128xf32>
    %5 = arith.maximumf %3, %4 : vector<16x128xf32>
    %c0_3 = arith.constant 0 : index
    %c0_4 = arith.constant 0 : index
    %6 = vector.load %arg3[%c0_3, %c0_4] : memref<1x128xf32, #tpu.memory_space<vmem>>, vector<1x128xf32>
    %7 = vector.broadcast %6 : vector<1x128xf32> to vector<16x128xf32>
    %8 = arith.addf %5, %7 : vector<16x128xf32>
    %cst_5 = arith.constant 0.000000e+00 : f32
    %9 = vector.broadcast %cst_5 : f32 to vector<16x128xf32>
    %10 = arith.maximumf %8, %9 : vector<16x128xf32>
    %11 = arith.truncf %10 : vector<16x128xf32> to vector<16x128xbf16>
    %c0_6 = arith.constant 0 : index
    %c0_7 = arith.constant 0 : index
    %12 = vector.load %arg4[%c0_6, %c0_7] : memref<128x64xbf16, #tpu.memory_space<vmem>>, vector<128x64xbf16>
    %cst_8 = arith.constant dense<0.000000e+00> : vector<16x64xf32>
    %13 = tpu.matmul %11, %12, %cst_8 {dimension_numbers = #tpu.dot_dimension_numbers<[1], [0], [0], [1], [0, 0, 1, 1], [], []>} : vector<16x128xbf16>, vector<128x64xbf16>, vector<16x64xf32> -> vector<16x64xf32>
    %c0_9 = arith.constant 0 : index
    %c0_10 = arith.constant 0 : index
    %14 = vector.load %arg5[%c0_9, %c0_10] : memref<1x64xf32, #tpu.memory_space<vmem>>, vector<1x64xf32>
    %15 = vector.broadcast %14 : vector<1x64xf32> to vector<16x64xf32>
    %16 = arith.addf %13, %15 : vector<16x64xf32>
    %cst_11 = arith.constant 0.000000e+00 : f32
    %17 = vector.broadcast %cst_11 : f32 to vector<16x64xf32>
    %18 = arith.maximumf %16, %17 : vector<16x64xf32>
    %c0_12 = arith.constant 0 : index
    %c0_13 = arith.constant 0 : index
    %19 = vector.load %arg6[%c0_12, %c0_13] : memref<2x64xf32, #tpu.memory_space<vmem>>, vector<2x64xf32>
    %20 = vector.extract_strided_slice %19 {offsets = [0, 0], sizes = [1, 64], strides = [1, 1]} : vector<2x64xf32> to vector<1x64xf32>
    %21 = vector.broadcast %20 : vector<1x64xf32> to vector<16x64xf32>
    %22 = arith.mulf %18, %21 : vector<16x64xf32>
    %cst_14 = arith.constant dense<0.000000e+00> : vector<16xf32>
    %23 = vector.multi_reduction <add>, %22, %cst_14 [1] : vector<16x64xf32> to vector<16xf32>
    %24 = vector.shape_cast %23 : vector<16xf32> to vector<16x1xf32>
    %25 = vector.extract_strided_slice %19 {offsets = [1, 0], sizes = [1, 64], strides = [1, 1]} : vector<2x64xf32> to vector<1x64xf32>
    %26 = vector.broadcast %25 : vector<1x64xf32> to vector<16x64xf32>
    %27 = arith.mulf %18, %26 : vector<16x64xf32>
    %cst_15 = arith.constant dense<0.000000e+00> : vector<16xf32>
    %28 = vector.multi_reduction <add>, %27, %cst_15 [1] : vector<16x64xf32> to vector<16xf32>
    %29 = vector.shape_cast %28 : vector<16xf32> to vector<16x1xf32>
    %30 = tpu.concatenate %24, %29 in 1 : vector<16x1xf32>, vector<16x1xf32> -> vector<16x2xf32>
    %c0_16 = arith.constant 0 : index
    %c0_17 = arith.constant 0 : index
    %31 = vector.load %arg7[%c0_16, %c0_17] : memref<1x2xf32, #tpu.memory_space<vmem>>, vector<1x2xf32>
    %32 = vector.broadcast %31 : vector<1x2xf32> to vector<16x2xf32>
    %33 = arith.addf %30, %32 : vector<16x2xf32>
    %c0_18 = arith.constant 0 : index
    %c0_19 = arith.constant 0 : index
    %34 = vector.load %arg8[%c0_18, %c0_19] : memref<16x2xf32, #tpu.memory_space<vmem>>, vector<16x2xf32>
    tpu.vector_store %arg8[%c0_18, %c0_19], %33 {strides = array<i32>} : memref<16x2xf32, #tpu.memory_space<vmem>>, vector<16x2xf32>,
    return
  }
  func.func @transform_0(%arg0: i32) -> (i32, i32) {
    %c0_i32 = arith.constant 0 : i32
    %c0_i32_0 = arith.constant 0 : i32
    return %arg0, %c0_i32 : i32, i32
  }
  func.func @transform_1(%arg0: i32) -> (i32, i32) {
    %c0_i32 = arith.constant 0 : i32
    %c0_i32_0 = arith.constant 0 : i32
    %c0_i32_1 = arith.constant 0 : i32
    return %c0_i32, %c0_i32_0 : i32, i32
  }
  func.func @transform_2(%arg0: i32) -> (i32, i32) {
    %c0_i32 = arith.constant 0 : i32
    %c0_i32_0 = arith.constant 0 : i32
    %c0_i32_1 = arith.constant 0 : i32
    return %c0_i32, %c0_i32_0 : i32, i32
  }
  func.func @transform_3(%arg0: i32) -> (i32, i32) {
    %c0_i32 = arith.constant 0 : i32
    %c0_i32_0 = arith.constant 0 : i32
    %c0_i32_1 = arith.constant 0 : i32
    return %c0_i32, %c0_i32_0 : i32, i32
  }
  func.func @transform_4(%arg0: i32) -> (i32, i32) {
    %c0_i32 = arith.constant 0 : i32
    %c0_i32_0 = arith.constant 0 : i32
    %c0_i32_1 = arith.constant 0 : i32
    return %c0_i32, %c0_i32_0 : i32, i32
  }
  func.func @transform_5(%arg0: i32) -> (i32, i32) {
    %c0_i32 = arith.constant 0 : i32
    %c0_i32_0 = arith.constant 0 : i32
    %c0_i32_1 = arith.constant 0 : i32
    return %c0_i32, %c0_i32_0 : i32, i32
  }
  func.func @transform_6(%arg0: i32) -> (i32, i32) {
    %c0_i32 = arith.constant 0 : i32
    %c0_i32_0 = arith.constant 0 : i32
    %c0_i32_1 = arith.constant 0 : i32
    return %c0_i32, %c0_i32_0 : i32, i32
  }
  func.func @transform_7(%arg0: i32) -> (i32, i32) {
    %c0_i32 = arith.constant 0 : i32
    %c0_i32_0 = arith.constant 0 : i32
    return %arg0, %c0_i32 : i32, i32
  }
}

</mosaic_0001>

<llo_original>
// kernel: tpu_custom_call.1
$region0: #{tpu_custom_call.1}
  #allocation0 [shape = 'u32[]', space=smem, size = 0x4, offset = 0x4, fixed_abs, tag = 'smem constant byte address 0x4 - core index']
  #allocation1 [shape = 'u32[144,128]{1,0:T(1,128)}', space=vmem, size = 0x12000, scoped, tag = 'internal scratch']
  %s0 = inlined_call_operand.vmem [shape: bf16[16,16], index: 0, kind: input, shape index: {}]
  %s1 = inlined_call_operand.vmem [shape: bf16[16,256], index: 1, kind: input, shape index: {}]
  %s2 = inlined_call_operand.vmem [shape: f32[1,128], index: 2, kind: input, shape index: {}]
  %s3 = inlined_call_operand.vmem [shape: bf16[128,64], index: 3, kind: input, shape index: {}]
  %s4 = inlined_call_operand.vmem [shape: f32[1,64], index: 4, kind: input, shape index: {}]
  %s5 = inlined_call_operand.vmem [shape: f32[2,64], index: 5, kind: input, shape index: {}]
  %s6 = inlined_call_operand.vmem [shape: f32[1,2], index: 6, kind: input, shape index: {}]
  %s7 = inlined_call_operand.vmem [shape: f32[16,2], index: 7, kind: output, shape index: {}]
  %s8 = sld [smem:[#allocation0]]
  $region38: #{tpu_custom_call.1} parent=0
    _
  %s10 = ssub.s32 1, %s8
  %s11 = scalar_select 0, %s10, %s8
  // Predicated region
  $region2: #{tpu_custom_call.1} parent=0 // pred_check
    _
  $region3: #{tpu_custom_call.1} parent=0 // pred_check_branch
    %13 = sbr.rel (0) target = $region5
  $region4: #{tpu_custom_call.1} parent=0 // pred_region
    _
  $region5: #{tpu_custom_call.1} parent=0 // pred_fallthru
    _
  // Predicated region
  $region6: #{tpu_custom_call.1} parent=0 // pred_check
    _
  $region7: #{tpu_custom_call.1} parent=0 // pred_check_branch
    %15 = sbr.rel (0) target = $region9
  $region8: #{tpu_custom_call.1} parent=0 // pred_region
    _
  $region9: #{tpu_custom_call.1} parent=0 // pred_fallthru
    _
  // Predicated region
  $region10: #{tpu_custom_call.1} parent=0 // pred_check
    _
  $region11: #{tpu_custom_call.1} parent=0 // pred_check_branch
    %17 = sbr.rel (0) target = $region13
  $region12: #{tpu_custom_call.1} parent=0 // pred_region
    _
  $region13: #{tpu_custom_call.1} parent=0 // pred_fallthru
    _
  // Predicated region
  $region14: #{tpu_custom_call.1} parent=0 // pred_check
    _
  $region15: #{tpu_custom_call.1} parent=0 // pred_check_branch
    %19 = sbr.rel (0) target = $region17
  $region16: #{tpu_custom_call.1} parent=0 // pred_region
    _
  $region17: #{tpu_custom_call.1} parent=0 // pred_fallthru
    _
  // Predicated region
  $region18: #{tpu_custom_call.1} parent=0 // pred_check
    _
  $region19: #{tpu_custom_call.1} parent=0 // pred_check_branch
    %21 = sbr.rel (0) target = $region21
  $region20: #{tpu_custom_call.1} parent=0 // pred_region
    _
  $region21: #{tpu_custom_call.1} parent=0 // pred_fallthru
    _
  // Predicated region
  $region22: #{tpu_custom_call.1} parent=0 // pred_check
    _
  $region23: #{tpu_custom_call.1} parent=0 // pred_check_branch
    %23 = sbr.rel (0) target = $region25
  $region24: #{tpu_custom_call.1} parent=0 // pred_region
    _
  $region25: #{tpu_custom_call.1} parent=0 // pred_fallthru
    _
  // Predicated region
  $region26: #{tpu_custom_call.1} parent=0 // pred_check
    _
  $region27: #{tpu_custom_call.1} parent=0 // pred_check_branch
    %25 = sbr.rel (0) target = $region29
  $region28: #{tpu_custom_call.1} parent=0 // pred_region
    _
  $region29: #{tpu_custom_call.1} parent=0 // pred_fallthru
    _
  %v27 = vld [vmem:[%s0] sm:$0xf]
  %v28 = vld [vmem:[%s0 + $0x4] sm:$0xf]
  %v29 = vld [vmem:[%s1] sm:$0xff]
  %v30 = vld [vmem:[%s1 + $0x8] sm:$0xff]
  %v33 = vunpack.c.l.b16 %v27
  %v34 = vunpack.c.l.b16 %v28
  %v35 = vpack.c.b16 %v34, %v33
  %v38 = vunpack.c.l.b16 %v29
  %v39 = vunpack.c.h.b16 %v29
  %v40 = vunpack.c.l.b16 %v30
  %v41 = vunpack.c.h.b16 %v30
  %v42 = vpack.c.b16 %v40, %v38
  %v43 = vpack.c.b16 %v41, %v39
  %vm46 = vcmask 130048
  %v48 = vsel %vm46, %v35, 0
  %50 = vmatprep.subr.bf16.mxu0 0
  %51 = vmatpush1.bf16.msra.mxu0 0
  %52 = vmatprep.subr.bf16.mxu0 0
  %53 = vmatpush1.bf16.msra.mxu0 0
  %54 = vmatprep.subr.bf16.mxu0 0
  %55 = vmatpush1.bf16.msra.mxu0 0
  %56 = vmatprep.subr.bf16.mxu0 0
  %57 = vmatpush1.bf16.msra.mxu0 0
  %58 = vmatprep.subr.bf16.mxu0 0
  %59 = vmatpush1.bf16.msra.mxu0 0
  %60 = vmatprep.subr.bf16.mxu0 0
  %61 = vmatpush1.bf16.msra.mxu0 0
  %62 = vmatprep.subr.bf16.mxu0 0
  %63 = vmatpush1.bf16.msra.mxu0 0
  %64 = vmatprep.subr.bf16.mxu0 %v43
  %65 = vmatpush1.bf16.msra.mxu0 %v42
  %66 = vmatprep.subr.bf16.mxu0 0
  %67 = vmatpush2.bf16.msra.mxu0 0
  %68 = vmatprep.subr.bf16.mxu0 0
  %69 = vmatpush2.bf16.msra.mxu0 0
  %70 = vmatprep.subr.bf16.mxu0 0
  %71 = vmatpush2.bf16.msra.mxu0 0
  %72 = vmatprep.subr.bf16.mxu0 0
  %73 = vmatpush2.bf16.msra.mxu0 0
  %74 = vmatprep.subr.bf16.mxu0 0
  %75 = vmatpush2.bf16.msra.mxu0 0
  %76 = vmatprep.subr.bf16.mxu0 0
  %77 = vmatpush2.bf16.msra.mxu0 0
  %78 = vmatprep.subr.bf16.mxu0 0
  %79 = vmatpush2.bf16.msra.mxu0 0
  %80 = vmatprep.subr.bf16.mxu0 0
  %81 = vmatpush2.bf16.msra.mxu0 0
  %82 = vmatprep.mubr.bf16.mxu0 0
  %83 = vmatmul.mubr.bf16.gmra.mxu0 %v48
  %v84 = vpop.f32.mrf.mxu0
  %v85 = vadd.f32 0.0, %v84
  %v86 = vpop.f32.mrf.mxu0
  %v87 = vadd.f32 0.0, %v86
  %v88 = vpop.f32.mrf.mxu0
  %v89 = vadd.f32 0.0, %v88
  %v90 = vpop.f32.mrf.mxu0
  %v91 = vadd.f32 0.0, %v90
  %92 = vdwg.mxu0
  %v93 = vmax.f32 %v85, %v87
  %v94 = vmax.f32 %v89, %v91
  %v95 = vld [vmem:[%s2] sm:$0x1]
  %v97 = vlaneseq
  %v98 = vshrl.u32 %v97, 7
  %v99 = vsub.s32 0, %v98
  %v100 = vrot.slane %v95, %v99
  %v102 = vadd.f32 %v93, %v100
  %v103 = vadd.f32 %v94, %v100
  %v104 = vmax.f32 %v102, 0.0
  %v105 = vmax.f32 %v103, 0.0
  %v106 = vpack.c.bf16 %v105, %v104
  %v107 = vld [vmem:[%s3] sm:$0xf]
  %v108 = vld [vmem:[%s3 + $0x4] sm:$0xf]
  %v109 = vld [vmem:[%s3 + $0x8] sm:$0xf]
  %v110 = vld [vmem:[%s3 + $0xc] sm:$0xf]
  %v111 = vld [vmem:[%s3 + $0x10] sm:$0xf]
  %v112 = vld [vmem:[%s3 + $0x14] sm:$0xf]
  %v113 = vld [vmem:[%s3 + $0x18] sm:$0xf]
  %v114 = vld [vmem:[%s3 + $0x1c] sm:$0xf]
  %v115 = vld [vmem:[%s3 + $0x20] sm:$0xf]
  %v116 = vld [vmem:[%s3 + $0x24] sm:$0xf]
  %v117 = vld [vmem:[%s3 + $0x28] sm:$0xf]
  %v118 = vld [vmem:[%s3 + $0x2c] sm:$0xf]
  %v119 = vld [vmem:[%s3 + $0x30] sm:$0xf]
  %v120 = vld [vmem:[%s3 + $0x34] sm:$0xf]
  %v121 = vld [vmem:[%s3 + $0x38] sm:$0xf]
  %v122 = vld [vmem:[%s3 + $0x3c] sm:$0xf]
  %v123 = vld [vmem:[%s4] sm:$0x1]
  %v125 = vlaneseq
  %v126 = vshrl.u32 %v125, 7
  %v127 = vsub.s32 0, %v126
  %v128 = vrot.slane %v123, %v127
  %v146 = vunpack.c.l.b16 %v107
  %v147 = vunpack.c.l.b16 %v108
  %v148 = vunpack.c.l.b16 %v109
  %v149 = vunpack.c.l.b16 %v110
  %v150 = vunpack.c.l.b16 %v111
  %v151 = vunpack.c.l.b16 %v112
  %v152 = vunpack.c.l.b16 %v113
  %v153 = vunpack.c.l.b16 %v114
  %v154 = vunpack.c.l.b16 %v115
  %v155 = vunpack.c.l.b16 %v116
  %v156 = vunpack.c.l.b16 %v117
  %v157 = vunpack.c.l.b16 %v118
  %v158 = vunpack.c.l.b16 %v119
  %v159 = vunpack.c.l.b16 %v120
  %v160 = vunpack.c.l.b16 %v121
  %v161 = vunpack.c.l.b16 %v122
  %v162 = vpack.c.b16 %v147, %v146
  %v163 = vpack.c.b16 %v149, %v148
  %v164 = vpack.c.b16 %v151, %v150
  %v165 = vpack.c.b16 %v153, %v152
  %v166 = vpack.c.b16 %v155, %v154
  %v167 = vpack.c.b16 %v157, %v156
  %v168 = vpack.c.b16 %v159, %v158
  %v169 = vpack.c.b16 %v161, %v160
  %178 = vmatprep.subr.bf16.mxu0 0
  %179 = vmatpush1.bf16.msra.mxu0 %v169
  %180 = vmatprep.subr.bf16.mxu0 0
  %181 = vmatpush1.bf16.msra.mxu0 %v168
  %182 = vmatprep.subr.bf16.mxu0 0
  %183 = vmatpush1.bf16.msra.mxu0 %v167
  %184 = vmatprep.subr.bf16.mxu0 0
  %185 = vmatpush1.bf16.msra.mxu0 %v166
  %186 = vmatprep.subr.bf16.mxu0 0
  %187 = vmatpush1.bf16.msra.mxu0 %v165
  %188 = vmatprep.subr.bf16.mxu0 0
  %189 = vmatpush1.bf16.msra.mxu0 %v164
  %190 = vmatprep.subr.bf16.mxu0 0
  %191 = vmatpush1.bf16.msra.mxu0 %v163
  %192 = vmatprep.subr.bf16.mxu0 0
  %193 = vmatpush1.bf16.msra.mxu0 %v162
  %194 = vmatprep.subr.bf16.mxu0 0
  %195 = vmatpush2.bf16.msra.mxu0 0
  %196 = vmatprep.subr.bf16.mxu0 0
  %197 = vmatpush2.bf16.msra.mxu0 0
  %198 = vmatprep.subr.bf16.mxu0 0
  %199 = vmatpush2.bf16.msra.mxu0 0
  %200 = vmatprep.subr.bf16.mxu0 0
  %201 = vmatpush2.bf16.msra.mxu0 0
  %202 = vmatprep.subr.bf16.mxu0 0
  %203 = vmatpush2.bf16.msra.mxu0 0
  %204 = vmatprep.subr.bf16.mxu0 0
  %205 = vmatpush2.bf16.msra.mxu0 0
  %206 = vmatprep.subr.bf16.mxu0 0
  %207 = vmatpush2.bf16.msra.mxu0 0
  %208 = vmatprep.subr.bf16.mxu0 0
  %209 = vmatpush2.bf16.msra.mxu0 0
  %210 = vmatprep.mubr.bf16.mxu0 0
  %211 = vmatmul.mubr.bf16.gmra.mxu0 %v106
  %v212 = vpop.f32.mrf.mxu0
  %v213 = vadd.f32 %v128, %v212
  %v214 = vpop.f32.mrf.mxu0
  %v215 = vpop.f32.mrf.mxu0
  %v216 = vadd.f32 %v128, %v215
  %v217 = vpop.f32.mrf.mxu0
  %218 = vdwg.mxu0
  %v219 = vmax.f32 %v213, 0.0
  %v220 = vmax.f32 %v216, 0.0
  %v221 = vld [vmem:[%s5] sm:$0x3]
  %v222 = vlaneseq
  %v223 = vshrl.u32 %v222, 7
  %v224 = vsub.s32 0, %v223
  %v225 = vrot.slane %v221, %v224
  %v226 = vmul.f32 %v219, %v225
  %v227 = vmul.f32 %v220, %v225
  %vm228 = vcmask 523264
  %v229 = vsel %vm228, %v226, 0.0
  %230 = vadd.xlane.f32.xlu0 %v229
  %v231 = vpop.xlane.xlu0 %230
  %v232 = vsel %vm228, %v227, 0.0
  %233 = vadd.xlane.f32.xlu0 %v232
  %v234 = vpop.xlane.xlu0 %233
  %v235 = vlaneseq
  %v236 = vshrl.u32 %v235, 7
  %v237 = vsub.s32 1, %v236
  %v238 = vrot.slane %v221, %v237
  %v239 = vmul.f32 %v219, %v238
  %v240 = vmul.f32 %v220, %v238
  %v241 = vsel %vm228, %v239, 0.0
  %242 = vadd.xlane.f32.xlu0 %v241
  %v243 = vpop.xlane.xlu0 %242
  %v244 = vsel %vm228, %v240, 0.0
  %245 = vadd.xlane.f32.xlu0 %v244
  %v246 = vpop.xlane.xlu0 %245
  %vm247 = vcmask 7168
  %v248 = vsel %vm247, %v231, %v243
  %v249 = vsel %vm247, %v234, %v246
  %v250 = vld [vmem:[%s6] sm:$0x1]
  %v252 = vlaneseq
  %v253 = vshrl.u32 %v252, 7
  %v254 = vsub.s32 0, %v253
  %v255 = vrot.slane %v250, %v254
  %v257 = vadd.f32 %v248, %v255
  %v258 = vadd.f32 %v249, %v255
  %vm259 = vcmask 15360
  %260 = vst.msk [vmem:[%s7] sm:$0xff] %vm259, %v257
  %261 = vst.msk [vmem:[%s7 + $0x8] sm:$0xff] %vm259, %v258
  // Predicated region
  $region30: #{tpu_custom_call.1} parent=0 // pred_check
    _
  $region31: #{tpu_custom_call.1} parent=0 // pred_check_branch
    %263 = sbr.rel (0) target = $region33
  $region32: #{tpu_custom_call.1} parent=0 // pred_region
    _
  $region33: #{tpu_custom_call.1} parent=0 // pred_fallthru
    _
  // Predicated region
  $region34: #{tpu_custom_call.1} parent=0 // pred_check
    _
  $region35: #{tpu_custom_call.1} parent=0 // pred_check_branch
    %265 = sbr.rel (0) target = $region37
  $region36: #{tpu_custom_call.1} parent=0 // pred_region
    _
  $region37: #{tpu_custom_call.1} parent=0 // pred_fallthru
    _

</llo_original>
